<compile_context>
chip_gen: v5e
topology: v5e:2x2
jax: 0.10.0
libtpu: 0.0.40
codegen_flags: <defaults>
</compile_context>

<pallas_src>
import jax
import jax.numpy as jnp
import numpy as np
from jax.experimental import pallas as pl
from jax.experimental.pallas import tpu as pltpu


# ----------------------------------------------------------------------------
# Pallas kernel: sparse gather + weighted accumulate
#   out[i, :] = sum_s  w_norm[i, s] * E[idx[i, s], :]
# where w_norm has the mean denominator already folded in on the host.
# ----------------------------------------------------------------------------
def _gather_weighted_sum_kernel(idx_smem, w_smem, e_ref, o_ref):
    i = pl.program_id(0)            # pocket-row index ("parallel" axis)
    s = pl.program_id(1)            # neighbor-slot index (accumulation axis)
    s_max = pl.num_programs(1)

    @pl.when(s == 0)
    def _init():
        o_ref[...] = jnp.zeros_like(o_ref)

    w = w_smem[i * s_max + s]       # f32 scalar read from SMEM
    o_ref[...] += w * e_ref[...]    # [1, 1, Dp] VPU multiply-accumulate


def sparse_weighted_mean_aggregate(nbr_idx, nbr_w_norm, embed_table):
    """nbr_idx: [Np, S] int32; nbr_w_norm: [Np, S] f32 (denominator folded in);
    embed_table: [Nm, D] f32.  Returns [Np, D] f32 weighted-mean features."""
    n_pocket, s_max = nbr_idx.shape
    n_mol, d = embed_table.shape
    d_pad = ((d + 127) // 128) * 128              # lane-align the embed dim

    e = embed_table
    if d_pad != d:
        e = jnp.pad(e, ((0, 0), (0, d_pad - d)))
    e = e.reshape(n_mol, 1, d_pad)                # blocks == full last-2 dims

    # Flatten scalar-prefetch arrays to 1D (best SMEM padding behavior).
    # TODO(synk): for very large batches (Np*S >~ 64K) chunk nodes_pocket in
    # the wrapper so the SMEM-resident index/weight arrays stay small.
    idx_flat = nbr_idx.astype(jnp.int32).reshape(-1)
    w_flat = nbr_w_norm.astype(jnp.float32).reshape(-1)

    def e_index_map(i, s, idx_ref, w_ref):
        return (idx_ref[i * s_max + s], 0, 0)     # data-dependent row gather

    def o_index_map(i, s, idx_ref, w_ref):
        return (i, 0, 0)                          # resident across s -> accumulator

    cost = pl.CostEstimate(
        flops=2 * n_pocket * s_max * d_pad,
        transcendentals=0,
        bytes_accessed=(n_pocket * s_max * d_pad * 4   # gathered E rows
                        + n_pocket * d_pad * 4          # output
                        + n_pocket * s_max * 8),        # indices + weights
    )

    out = pl.pallas_call(
        _gather_weighted_sum_kernel,
        out_shape=jax.ShapeDtypeStruct((n_pocket, 1, d_pad), jnp.float32),
        grid_spec=pltpu.PrefetchScalarGridSpec(
            num_scalar_prefetch=2,
            grid=(n_pocket, s_max),
            in_specs=[pl.BlockSpec((1, 1, d_pad), e_index_map)],
            out_specs=pl.BlockSpec((1, 1, d_pad), o_index_map),
        ),
        compiler_params=pltpu.CompilerParams(
            dimension_semantics=("parallel", "arbitrary"),
            vmem_limit_bytes=32 * 1024 * 1024,
        ),
        cost_estimate=cost,
    )(idx_flat, w_flat, e)

    return out.reshape(n_pocket, d_pad)[:, :d]


# ----------------------------------------------------------------------------
# PLEncoder re-implementation (Python bookkeeping + Pallas sparse aggregator)
# ----------------------------------------------------------------------------
class PLEncoderPallas:
    def __init__(self, embed_dim, pocket_graph, mol_embed_table,
                 idx2assayid, assayid_lst_train, mol_smi, train_label_lst):
        self.embed_dim = embed_dim
        self.pocket_graph = pocket_graph
        self.mol_embed_table = mol_embed_table       # the aggregator's feature table
        self.idx2assayid = idx2assayid
        self.assayid_lst_train = assayid_lst_train
        self.assayid_set_train = set(assayid_lst_train)
        self.mol_smi = mol_smi
        self.smi2idx = {smi: idx for idx, smi in enumerate(mol_smi)}
        self.train_label_lst = train_label_lst
        self.label_dicts = {x['assay_id']: x for x in train_label_lst}

        # linear1 = nn.Linear(2*embed_dim, embed_dim): deterministic init only.
        # TODO(synk): linear1 is declared in the reference __init__ but never
        # applied in PLEncoder.forward, so it is initialized for parity only.
        k = jax.random.PRNGKey(123)
        kw, kb = jax.random.split(k)
        bound = 1.0 / (2 * embed_dim) ** 0.5
        self.linear1_w = jax.random.uniform(
            kw, (embed_dim, 2 * embed_dim), jnp.float32, -bound, bound)
        self.linear1_b = jax.random.uniform(
            kb, (embed_dim,), jnp.float32, -bound, bound)

    def _build_to_neighs(self, nodes_pocket, nodes_lig):
        """Exact port of the Python loop in PLEncoder.forward (host glue)."""
        if nodes_lig is None:
            lig_smi_lst = ['----'] * len(nodes_pocket)
        else:
            lig_smi_lst = [self.mol_smi[lig_id] for lig_id in nodes_lig]
        to_neighs = []
        for node, smi in zip(nodes_pocket, lig_smi_lst):
            assayid = self.idx2assayid[node]
            neighbors = []
            nbr_pockets = self.pocket_graph.get(assayid, [])
            for n_assayid, score in nbr_pockets:
                nbr_smi = self.label_dicts[n_assayid]['ligands'][0]['smi']
                if assayid == n_assayid:
                    continue
                if smi == nbr_smi:
                    continue
                if n_assayid not in self.assayid_set_train:
                    continue
                neighbors.append((self.smi2idx[nbr_smi], int((score - 0.5) * 10)))
            to_neighs.append(neighbors)
        return to_neighs

    def forward(self, nodes_pocket, nodes_lig=None, max_sample=10):
        to_neighs = self._build_to_neighs(nodes_pocket, nodes_lig)

        # Sparse neighbor lists -> [Np, S] index / weight arrays (O(Np*S) work;
        # no dense [Np, Nm] matrix is ever built).
        n_pocket = len(nodes_pocket)
        idx = np.zeros((n_pocket, max_sample), dtype=np.int32)
        w = np.zeros((n_pocket, max_sample), dtype=np.float32)
        for i, nbrs in enumerate(to_neighs):
            for j, (mol_idx, weight) in enumerate(nbrs[:max_sample]):
                idx[i, j] = mol_idx
                w[i, j] = float(weight)

        # Fold the weighted-mean denominator into the weights (host side).
        denom = w.sum(axis=1, keepdims=True)
        denom = np.where(denom == 0.0, 1.0, denom)   # isolated / zero-weight rows
        w_norm = (w / denom).astype(np.float32)

        return sparse_weighted_mean_aggregate(
            jnp.asarray(idx), jnp.asarray(w_norm), self.mol_embed_table)


# ----------------------------------------------------------------------------
# Deterministic synthetic graph / data setup + run + reference check
# ----------------------------------------------------------------------------
if __name__ == "__main__":
    embed_dim = 32
    n_mol = 16          # molecules (embedding-table rows)
    n_assay = 12        # assays
    n_pocket = 8        # batch of pocket nodes queried in forward

    mol_smi = [f"SMI_{i:02d}" for i in range(n_mol)]
    idx2assayid = {i: f"assay_{i % n_assay}" for i in range(n_pocket)}
    assayid_lst_train = [f"assay_{a}" for a in range(n_assay)]
    train_label_lst = [
        {"assay_id": f"assay_{a}", "ligands": [{"smi": mol_smi[(3 * a + 1) % n_mol]}]}
        for a in range(n_assay)
    ]
    pocket_graph = {}
    for a in range(n_assay):
        nbrs = []
        for k in range(1, 4):
            nb = (a + k) % n_assay
            score = 0.5 + 0.05 * ((a + k) % 9)   # scores in [0.5, 0.9]
            nbrs.append((f"assay_{nb}", score))
        pocket_graph[f"assay_{a}"] = nbrs

    key = jax.random.PRNGKey(0)
    mol_embed_table = jax.random.normal(key, (n_mol, embed_dim), dtype=jnp.float32)

    enc = PLEncoderPallas(
        embed_dim=embed_dim,
        pocket_graph=pocket_graph,
        mol_embed_table=mol_embed_table,
        idx2assayid=idx2assayid,
        assayid_lst_train=assayid_lst_train,
        mol_smi=mol_smi,
        train_label_lst=train_label_lst,
    )

    nodes_pocket = list(range(n_pocket))
    neigh_feats = enc.forward(nodes_pocket, nodes_lig=None)
    jax.block_until_ready(neigh_feats)

    assert neigh_feats.shape == (n_pocket, embed_dim)
    assert neigh_feats.dtype == jnp.float32

    # Pure-numpy reference (dense formulation) for a correctness sanity check.
    to_neighs = enc._build_to_neighs(nodes_pocket, None)
    W = np.zeros((n_pocket, n_mol), dtype=np.float32)
    for i, nbrs in enumerate(to_neighs):
        for mol_idx, wt in nbrs[:10]:
            W[i, mol_idx] += float(wt)
    den = W.sum(axis=1, keepdims=True)
    den = np.where(den == 0.0, 1.0, den)
    ref = (W @ np.asarray(mol_embed_table)) / den
    np.testing.assert_allclose(np.asarray(neigh_feats), ref, rtol=1e-4, atol=1e-4)

    print("KERNEL_OK")
</pallas_src>

<mosaic_0001>
module attributes {stable_mosaic.version = 11 : i64} {
  func.func @_gather_weighted_sum_kernel(%arg0: i32, %arg1: i32, %arg2: memref<80xi32, #tpu.memory_space<smem>>, %arg3: memref<80xf32, #tpu.memory_space<smem>>, %arg4: memref<1x1x128xf32, #tpu.memory_space<vmem>>, %arg5: memref<1x1x128xf32, #tpu.memory_space<vmem>>) attributes {dimension_semantics = [#tpu.dimension_semantics<parallel>, #tpu.dimension_semantics<arbitrary>], iteration_bounds = array<i64: 8, 10>, scalar_prefetch = 2 : i64, scratch_operands = 0 : i64, tpu.core_type = #tpu.core_type<tc>, window_params = [{transform_indices = @transform_0, window_bounds = array<i64: 1, 1, 128>}, {transform_indices = @transform_1, window_bounds = array<i64: 1, 1, 128>}]} {
    %c0_i32 = arith.constant 0 : i32
    %0 = arith.cmpi eq, %arg1, %c0_i32 : i32
    %1 = arith.extui %0 : i1 to i32
    %c0_i32_0 = arith.constant 0 : i32
    %2 = arith.cmpi ne, %1, %c0_i32_0 : i32
    scf.if %2 {
      %cst = arith.constant 0.000000e+00 : f32
      %13 = vector.broadcast %cst : f32 to vector<1x1x128xf32>
      %c0_9 = arith.constant 0 : index
      %c0_10 = arith.constant 0 : index
      %c0_11 = arith.constant 0 : index
      %14 = vector.load %arg5[%c0_9, %c0_10, %c0_11] : memref<1x1x128xf32, #tpu.memory_space<vmem>>, vector<1x1x128xf32>
      tpu.vector_store %arg5[%c0_9, %c0_10, %c0_11], %13 {strides = array<i32>} : memref<1x1x128xf32, #tpu.memory_space<vmem>>, vector<1x1x128xf32>,
    } else {
    }
    %c10_i32 = arith.constant 10 : i32
    %3 = arith.muli %arg0, %c10_i32 : i32
    %4 = arith.addi %3, %arg1 : i32
    %5 = arith.index_cast %4 : i32 to index
    %6 = memref.load %arg3[%5] : memref<80xf32, #tpu.memory_space<smem>>
    %c0 = arith.constant 0 : index
    %c0_1 = arith.constant 0 : index
    %c0_2 = arith.constant 0 : index
    %7 = vector.load %arg5[%c0, %c0_1, %c0_2] : memref<1x1x128xf32, #tpu.memory_space<vmem>>, vector<1x1x128xf32>
    %c0_3 = arith.constant 0 : index
    %c0_4 = arith.constant 0 : index
    %c0_5 = arith.constant 0 : index
    %8 = vector.load %arg4[%c0_3, %c0_4, %c0_5] : memref<1x1x128xf32, #tpu.memory_space<vmem>>, vector<1x1x128xf32>
    %9 = vector.broadcast %6 : f32 to vector<1x1x128xf32>
    %10 = arith.mulf %9, %8 : vector<1x1x128xf32>
    %11 = arith.addf %7, %10 : vector<1x1x128xf32>
    %c0_6 = arith.constant 0 : index
    %c0_7 = arith.constant 0 : index
    %c0_8 = arith.constant 0 : index
    %12 = vector.load %arg5[%c0_6, %c0_7, %c0_8] : memref<1x1x128xf32, #tpu.memory_space<vmem>>, vector<1x1x128xf32>
    tpu.vector_store %arg5[%c0_6, %c0_7, %c0_8], %11 {strides = array<i32>} : memref<1x1x128xf32, #tpu.memory_space<vmem>>, vector<1x1x128xf32>,
    return
  }
  func.func @transform_0(%arg0: i32, %arg1: i32, %arg2: memref<80xi32, #tpu.memory_space<smem>>, %arg3: memref<80xf32, #tpu.memory_space<smem>>) -> (i32, i32, i32) {
    %c10_i32 = arith.constant 10 : i32
    %0 = arith.muli %arg0, %c10_i32 : i32
    %1 = arith.addi %0, %arg1 : i32
    %2 = arith.index_cast %1 : i32 to index
    %3 = memref.load %arg2[%2] : memref<80xi32, #tpu.memory_space<smem>>
    %c0_i32 = arith.constant 0 : i32
    %c0_i32_0 = arith.constant 0 : i32
    %c0_i32_1 = arith.constant 0 : i32
    return %3, %c0_i32, %c0_i32_0 : i32, i32, i32
  }
  func.func @transform_1(%arg0: i32, %arg1: i32, %arg2: memref<80xi32, #tpu.memory_space<smem>>, %arg3: memref<80xf32, #tpu.memory_space<smem>>) -> (i32, i32, i32) {
    %c0_i32 = arith.constant 0 : i32
    %c0_i32_0 = arith.constant 0 : i32
    %c0_i32_1 = arith.constant 0 : i32
    return %arg0, %c0_i32, %c0_i32_0 : i32, i32, i32
  }
}

</mosaic_0001>

<llo_original>
// kernel: tpu_custom_call.1
$region0: #{tpu_custom_call.1}
  #allocation0 [shape = 'u32[]', space=smem, size = 0x4, offset = 0x4, fixed_abs, tag = 'smem constant byte address 0x4 - core index']
  #allocation1 [shape = 'u32[72,128]{1,0:T(1,128)}', space=vmem, size = 0x9000, scoped, tag = 'internal scratch']
  #allocation2 [shape = 's32[1]{0}', space=sflag, size = 0x4, scoped, tag = 'scoped memory for tpu_custom_call.1']
  #allocation3 [shape = 'u8[512]{0}', space=smem, size = 0x200, scoped, tag = 'prefetched SMEM operand 0']
  #allocation4 [shape = 'u8[512]{0}', space=smem, size = 0x200, scoped, tag = 'prefetched SMEM operand 1']
  %s0 = inlined_call_operand.hbm [shape: s32[80], index: 0, kind: input, shape index: {}]
  %s1 = inlined_call_operand.hbm [shape: f32[80], index: 1, kind: input, shape index: {}]
  %s2 = inlined_call_operand.hbm [shape: f32[16,1,128], index: 2, kind: input, shape index: {}]
  %s3 = inlined_call_operand.hbm [shape: f32[8,1,128], index: 3, kind: output, shape index: {}]
  %s4 = sld [smem:[#allocation0]]
  $region45: #{tpu_custom_call.1} parent=0
    _
  %s6 = ssub.s32 1, %s4
  %s7 = scalar_select 0, %s6, %s4
  %s9 = sshll.u32 %s0, 4
  %s10 = int_to_ptr.hbm [resolvable:$true] %s9
  %12 = dma.hbm_to_smem %s10, 16, [#allocation3], [#allocation2]
  %s14 = sshll.u32 %s1, 4
  %s15 = int_to_ptr.hbm [resolvable:$true] %s14
  %17 = dma.hbm_to_smem %s15, 16, [#allocation4], [#allocation2]
  %19 = dma.done [#allocation2], 32
  %20 = sfence
  $region1: #{tpu_custom_call.1} parent=0
    #allocation5 [shape = 'u8[1024]{0}', space=vmem, size = 0x400, scoped, tag = 'input window, operand 2']
    #allocation6 [shape = 's32[2]{0}', space=sflag, size = 0x8, scoped, tag = 'scoped memory for tpu_custom_call.1']
    #allocation7 [shape = 's32[2]{0}', space=sflag, size = 0x8, scoped, tag = 'scoped memory for tpu_custom_call.1']
    #allocation8 [shape = 'u8[1024]{0}', space=vmem, size = 0x400, scoped, tag = 'output window, operand 0']
    %21 = vsyncpa [#allocation6], 0
    %s22 = scalar_lea.sflag [#allocation6], 1
    %23 = vsyncpa %s22, 0
    %24 = vsyncpa [#allocation7], 0
    %s25 = scalar_lea.sflag [#allocation7], 1
    %26 = vsyncpa %s25, 0
    loop: start=0, step=1, limit=82
    $region2: #{tpu_custom_call.1} parent=1 // loop_pre_header
      _
    $region3: #{tpu_custom_call.1} parent=1 // loop_header
      %s28 = sphi 0, %s32
      %p29 = scmp.ge.s32.totalorder %s28, 82
      %s35 = sphi 0, %s47
      %s36 = sphi 0, %s43
      %s37 = sphi 0, %s35
      %s38 = sphi 0, %s36
      %s39 = sphi 0, %s37
      %s40 = sphi 0, %s38
      %s56 = sphi 0, %s58
      %s59 = sphi 0, %s56
      %s60 = sphi 0, %s59
      %s76 = sphi 0, %s60
      %s82 = sphi 0, %s84
      %s85 = sphi 0, %s82
      %s86 = sphi 0, %s85
      %s102 = sphi 0, %s86
    $region4: #{tpu_custom_call.1} parent=1 // loop_header_branch
      %31 = sbr.rel (%p29) target = $region8
    $region5: #{tpu_custom_call.1} parent=1 // loop_body
      %s33 = ssub.s32 %s28, 1
      %s34 = ssub.s32 %s28, 2
      %s41 = sadd.s32 1, %s36
      %p42 = scmp.ge.s32.totalorder %s41, 10
      %s43 = scalar_select %p42, 0, %s41
      %s44 = sadd.s32 1, %s35
      %s45 = scalar_select %p42, %s44, %s35
      %p46 = scmp.ge.s32.totalorder %s45, 8
      %s47 = scalar_select %p46, 0, %s45
      %s48 = smul.u32 %s35, 10
      %s49 = sadd.s32 %s48, %s36
      %s50 = sld [smem:[#allocation3 + %s49]]
      %s51 = smul.u32 %s47, 10
      %s52 = sadd.s32 %s51, %s43
      %s53 = sld [smem:[#allocation3 + %s52]]
      %s54 = ssub.s32 %s50, %s53
      %p55 = scmp.eq.s32.totalorder %s54, 0
      %s57 = sadd.s32 %s56, 1
      %s58 = scalar_select %p55, %s56, %s57
      %p61 = pneg %p55
      %p62 = scmp.eq.s32.totalorder %s28, 79
      %p63 = por %p61, %p62
      %p64 = scmp.ne.s32.totalorder %s56, %s59
      %p65 = scmp.eq.s32.totalorder %s28, 0
      %p66 = por %p64, %p65
      %p67 = scmp.ne.s32.totalorder %s56, %s59
      %p68 = scmp.eq.s32.totalorder %s33, 79
      %p69 = por %p67, %p68
      %p70 = scmp.ne.s32.totalorder %s59, %s60
      %p71 = scmp.eq.s32.totalorder %s33, 0
      %p72 = por %p70, %p71
      %p73 = scmp.ne.s32.totalorder %s59, %s60
      %p74 = scmp.eq.s32.totalorder %s34, 79
      %p75 = por %p73, %p74
      %p77 = scmp.ne.s32.totalorder %s60, %s76
      %p78 = scmp.eq.s32.totalorder %s34, 0
      %p79 = por %p77, %p78
      %s80 = ssub.s32 %s35, %s47
      %p81 = scmp.eq.s32.totalorder %s80, 0
      %s83 = sadd.s32 %s82, 1
      %s84 = scalar_select %p81, %s82, %s83
      %p87 = pneg %p81
      %p88 = scmp.eq.s32.totalorder %s28, 79
      %p89 = por %p87, %p88
      %p90 = scmp.ne.s32.totalorder %s82, %s85
      %p91 = scmp.eq.s32.totalorder %s28, 0
      %p92 = por %p90, %p91
      %p93 = scmp.ne.s32.totalorder %s82, %s85
      %p94 = scmp.eq.s32.totalorder %s33, 79
      %p95 = por %p93, %p94
      %p96 = scmp.ne.s32.totalorder %s85, %s86
      %p97 = scmp.eq.s32.totalorder %s33, 0
      %p98 = por %p96, %p97
      %p99 = scmp.ne.s32.totalorder %s85, %s86
      %p100 = scmp.eq.s32.totalorder %s34, 79
      %p101 = por %p99, %p100
      %p103 = scmp.ne.s32.totalorder %s86, %s102
      %p104 = scmp.eq.s32.totalorder %s34, 0
      %p105 = por %p103, %p104
      %p106 = scmp.le.s32.totalorder 1, %s28
      %p107 = scmp.lt.s32.totalorder %s28, 81
      %p108 = pnand %p106, %p107
      %p109 = pneg %p108
      // Predicated region
      $region9: #{tpu_custom_call.1} parent=5 // pred_check
        _
      $region10: #{tpu_custom_call.1} parent=5 // pred_check_branch
        %111 = sbr.rel (%p108) target = $region12
      $region11: #{tpu_custom_call.1} parent=5 // pred_region
        %s112 = ssub.s32 %s28, 1
      $region12: #{tpu_custom_call.1} parent=5 // pred_fallthru
        _
      %p113 = scmp.lt.s32.totalorder %s28, 80
      // Predicated region
      $region13: #{tpu_custom_call.1} parent=5 // pred_check
        %p114 = pneg %p113
      $region14: #{tpu_custom_call.1} parent=5 // pred_check_branch
        %116 = sbr.rel (%p114) target = $region16
      $region15: #{tpu_custom_call.1} parent=5 // pred_region
        // Predicated region
        $region17: #{tpu_custom_call.1} parent=15 // pred_check
          %p117 = pneg %p66
        $region18: #{tpu_custom_call.1} parent=15 // pred_check_branch
          %119 = sbr.rel (%p117) target = $region20
        $region19: #{tpu_custom_call.1} parent=15 // pred_region
          %s120 = sand.u32 %s56, 1
          %s121 = scalar_lea.sflag [#allocation6], %s120
          %s122 = sand.u32 %s56, 1
          %s123 = scalar_lea.vmem [#allocation5], %s122
          %s124 = smul.u32 %s35, 10
          %s125 = sadd.s32 %s124, %s36
          %s126 = sld [smem:[#allocation3 + %s125]]
          %128 = vsyncadd %s121, 0
          %s129 = scalar_lea.hbm %s2, %s126
          %s131 = sshll.u32 %s129, 4
          %s132 = int_to_ptr.hbm [resolvable:$true] %s131
          %s133 = sshll.u32 %s123, 4
          %s134 = int_to_ptr.vmem [resolvable:$true] %s133
          %136 = dma.hbm_to_vmem [thread:$0]  %s132, 16, %s134, %s121
        $region20: #{tpu_custom_call.1} parent=15 // pred_fallthru
          _
      $region16: #{tpu_custom_call.1} parent=5 // pred_fallthru
        _
      %p137 = scmp.le.s32.totalorder 1, %s28
      %p138 = scmp.lt.s32.totalorder %s28, 81
      %p139 = pnand %p137, %p138
      %p140 = pneg %p139
      // Predicated region
      $region21: #{tpu_custom_call.1} parent=5 // pred_check
        _
      $region22: #{tpu_custom_call.1} parent=5 // pred_check_branch
        %142 = sbr.rel (%p139) target = $region24
      $region23: #{tpu_custom_call.1} parent=5 // pred_region
        %s143 = ssub.s32 %s28, 1
        %s144 = sand.u32 %s59, 1
        %s145 = scalar_lea.sflag [#allocation6], %s144
        %s146 = sand.u32 %s59, 1
        %s147 = scalar_lea.vmem [#allocation5], %s146
        // Predicated region
        $region25: #{tpu_custom_call.1} parent=23 // pred_check
          %p148 = pneg %p72
        $region26: #{tpu_custom_call.1} parent=23 // pred_check_branch
          %150 = sbr.rel (%p148) target = $region28
        $region27: #{tpu_custom_call.1} parent=23 // pred_region
          %152 = dma.done %s145, 16
        $region28: #{tpu_custom_call.1} parent=23 // pred_fallthru
          _
        %s153 = sand.u32 %s59, 1
        %s154 = scalar_lea.sflag [#allocation6], %s153
        %s155 = sand.u32 %s59, 1
        %s156 = scalar_lea.vmem [#allocation5], %s155
        %p157 = pneg %p72
        %p158 = pneg %p69
        %p159 = pneg %p98
        %p160 = pneg %p95
        %s161 = sand.u32 %s85, 1
        %s162 = scalar_lea.sflag [#allocation7], %s161
        %s163 = sand.u32 %s85, 1
        %s164 = scalar_lea.vmem [#allocation8], %s163
        %s165 = smul.u32 %s37, 10
        %s166 = sadd.s32 %s165, %s38
        %s167 = sld [smem:[#allocation3 + %s166]]
        %p168 = scmp.eq.s32.totalorder %s38, 0
        // Predicated region
        $region29: #{tpu_custom_call.1} parent=23 // pred_check
          %p169 = pneg %p168
        $region30: #{tpu_custom_call.1} parent=23 // pred_check_branch
          %171 = sbr.rel (%p169) target = $region32
        $region31: #{tpu_custom_call.1} parent=23 // pred_region
          %172 = vst [vmem:[%s164] sm:$0x1] 0.0
        $region32: #{tpu_custom_call.1} parent=23 // pred_fallthru
          _
        %s173 = smul.u32 %s37, 10
        %s174 = sadd.s32 %s173, %s38
        %s175 = sld [smem:[#allocation4 + %s174]]
        %v176 = vld [vmem:[%s164] sm:$0x1]
        %v177 = vld [vmem:[%s147] sm:$0x1]
        %v178 = vstv %s175
        %v179 = vmul.f32 %v178, %v177
        %v180 = vadd.f32 %v176, %v179
        %181 = vst [vmem:[%s164] sm:$0x1] %v180
        %s182 = sand.u32 %s85, 1
        %s183 = scalar_lea.sflag [#allocation7], %s182
        %s184 = sand.u32 %s85, 1
        %s185 = scalar_lea.vmem [#allocation8], %s184
        // Predicated region
        $region33: #{tpu_custom_call.1} parent=23 // pred_check
          %p186 = pneg %p95
        $region34: #{tpu_custom_call.1} parent=23 // pred_check_branch
          %188 = sbr.rel (%p186) target = $region36
        $region35: #{tpu_custom_call.1} parent=23 // pred_region
          %190 = vsyncadd %s183, 0
          %s191 = scalar_lea.hbm %s3, %s37
          %s193 = sshll.u32 %s185, 4
          %s194 = int_to_ptr.vmem [resolvable:$true] %s193
          %s195 = sshll.u32 %s191, 4
          %s196 = int_to_ptr.hbm [resolvable:$true] %s195
          %198 = dma.vmem_to_hbm [thread:$0]  %s194, 16, %s196, %s183
        $region36: #{tpu_custom_call.1} parent=23 // pred_fallthru
          _
      $region24: #{tpu_custom_call.1} parent=5 // pred_fallthru
        _
      %p199 = scmp.le.s32.totalorder 2, %s28
      // Predicated region
      $region37: #{tpu_custom_call.1} parent=5 // pred_check
        %p200 = pneg %p199
      $region38: #{tpu_custom_call.1} parent=5 // pred_check_branch
        %202 = sbr.rel (%p200) target = $region40
      $region39: #{tpu_custom_call.1} parent=5 // pred_region
        %s203 = ssub.s32 %s28, 2
        // Predicated region
        $region41: #{tpu_custom_call.1} parent=39 // pred_check
          %p204 = pneg %p101
        $region42: #{tpu_custom_call.1} parent=39 // pred_check_branch
          %206 = sbr.rel (%p204) target = $region44
        $region43: #{tpu_custom_call.1} parent=39 // pred_region
          %s207 = sand.u32 %s86, 1
          %s208 = scalar_lea.sflag [#allocation7], %s207
          %s209 = sand.u32 %s86, 1
          %s210 = scalar_lea.vmem [#allocation8], %s209
          %212 = dma.done %s208, 16
        $region44: #{tpu_custom_call.1} parent=39 // pred_fallthru
          _
      $region40: #{tpu_custom_call.1} parent=5 // pred_fallthru
        _
    $region6: #{tpu_custom_call.1} parent=1 // loop_footer
      %s32 = sadd.s32 1, %s28
    $region7: #{tpu_custom_call.1} parent=1 // loop_footer_branch
      %27 = sbr.rel target = $region3
    $region8: #{tpu_custom_call.1} parent=1 // loop_exit
      _
    %213 = vsyncpa [#allocation6], 1
    %s214 = scalar_lea.sflag [#allocation6], 1
    %215 = vsyncpa %s214, 1
    %216 = vsyncpa [#allocation7], 1
    %s217 = scalar_lea.sflag [#allocation7], 1
    %218 = vsyncpa %s217, 1

</llo_original>
